<compile_context>
chip_gen: v6e
topology: v6e:2x2x1
jax: 0.10.0
libtpu: 0.0.40
codegen_flags: <defaults>
</compile_context>

<pallas_src>
import functools

import jax
import jax.numpy as jnp
from jax.experimental import pallas as pl
from jax.experimental.pallas import tpu as pltpu


def critic_kernel(x_ref, w1_ref, b1_ref, w2_ref, b2_ref, w3_ref, b3_ref, o_ref):
    """One batch tile, computed transposed (h = W @ x^T) so the output is lane-dense."""
    cdt = w1_ref.dtype                      # bf16 iff the caller opted in, else f32
    x = x_ref[...].astype(cdt)              # (tb, in_dim); no-op cast on the f32 path

    # Layer 1: (h1, in) contracted with (tb, in) over `in` -> (h1, tb), f32 accumulate.
    h = jax.lax.dot_general(w1_ref[...], x, (((1,), (1,)), ((), ())),
                            preferred_element_type=jnp.float32)
    h = jnp.maximum(h + b1_ref[...], 0.0)

    # Layer 2: (h2, h1) @ (h1, tb) -> (h2, tb).
    h = jnp.dot(w2_ref[...], h.astype(cdt), preferred_element_type=jnp.float32)
    h = jnp.maximum(h + b2_ref[...], 0.0)

    # Output layer: (out_dim, h2) @ (h2, tb) -> (out_dim, tb)  (batch on the lane axis).
    out = jnp.dot(w3_ref[...], h.astype(cdt), preferred_element_type=jnp.float32)
    o_ref[...] = (out + b3_ref[...]).astype(o_ref.dtype)


def _round_up(a, m):
    return (a + m - 1) // m * m


def _derive_block_rows(in_dim, h1, h2, out_dim, x_itemsize):
    """Largest 128-aligned batch tile whose working set fits a ~32 MiB VMEM budget."""
    lane = 128
    budget = 32 * 1024 * 1024
    x_row = _round_up(in_dim, lane) * x_itemsize * 2          # double-buffered x block
    out_row = _round_up(out_dim, 8) * 4 * 2                   # double-buffered out block
    inter = (h1 + h2 + _round_up(out_dim, 8)) * 4             # f32 intermediates
    per_row = x_row + out_row + inter
    tb = budget // per_row
    tb = max(lane, min(4096, (tb // lane) * lane))
    return int(tb)


@functools.partial(jax.jit, static_argnames=("block_rows", "use_bf16"))
def critic_forward(x, params, *, block_rows=None, use_bf16=False):
    """Fused MLP forward.

    x: [B, input_dim].  params: PyTorch-layout weights w_i (out, in) and biases b_i (out,).
    Returns [B, output_dim] float32 (matches the torch module).
    """
    cdtype = jnp.bfloat16 if use_bf16 else jnp.float32
    w1 = params["w1"].astype(cdtype)                   # (h1, in_dim)
    w2 = params["w2"].astype(cdtype)                   # (h2, h1)
    w3 = params["w3"].astype(cdtype)                   # (out_dim, h2)
    b1 = params["b1"].reshape(-1, 1).astype(jnp.float32)
    b2 = params["b2"].reshape(-1, 1).astype(jnp.float32)
    b3 = params["b3"].reshape(-1, 1).astype(jnp.float32)

    B, in_dim = x.shape
    h1, h2, out_dim = w1.shape[0], w2.shape[0], w3.shape[0]

    if block_rows is None:
        block_rows = _derive_block_rows(in_dim, h1, h2, out_dim, x.dtype.itemsize)
    block_rows = max(128, (block_rows // 128) * 128)
    # Single full block when B is small (block == full dims, no masking needed);
    # otherwise a 128-aligned tile with a masked trailing partial block.
    tb = B if B <= block_rows else block_rows
    grid = (pl.cdiv(B, tb),)

    flops = 2 * B * (in_dim * h1 + h1 * h2 + h2 * out_dim)
    bytes_accessed = int(
        x.size * x.dtype.itemsize                      # x read (dominant stream)
        + B * out_dim * 4                              # output write
        + w1.size * w1.dtype.itemsize
        + w2.size * w2.dtype.itemsize
        + w3.size * w3.dtype.itemsize
        + (b1.size + b2.size + b3.size) * 4)

    out_t = pl.pallas_call(
        critic_kernel,
        out_shape=jax.ShapeDtypeStruct((out_dim, B), jnp.float32),
        grid_spec=pltpu.PrefetchScalarGridSpec(
            num_scalar_prefetch=0,
            grid=grid,
            in_specs=[
                pl.BlockSpec((tb, in_dim), lambda i: (i, 0)),   # x: tiled over batch rows
                pl.BlockSpec(w1.shape, lambda i: (0, 0)),       # weights/biases:
                pl.BlockSpec(b1.shape, lambda i: (0, 0)),       #   grid-invariant,
                pl.BlockSpec(w2.shape, lambda i: (0, 0)),       #   resident in VMEM
                pl.BlockSpec(b2.shape, lambda i: (0, 0)),
                pl.BlockSpec(w3.shape, lambda i: (0, 0)),
                pl.BlockSpec(b3.shape, lambda i: (0, 0)),
            ],
            out_specs=pl.BlockSpec((out_dim, tb), lambda i: (0, i)),  # lane-dense batch
        ),
        compiler_params=pltpu.CompilerParams(
            dimension_semantics=("parallel",),          # v7x: 2 TensorCores split batch
            vmem_limit_bytes=48 * 1024 * 1024),         # > v5e 16 MiB default, < v7x 64 MiB
        cost_estimate=pl.CostEstimate(
            flops=flops, transcendentals=0, bytes_accessed=bytes_accessed),
    )(x, w1, b1, w2, b2, w3, b3)

    # (out_dim, B) -> (B, out_dim); free reshape for out_dim == 1, tiny otherwise.
    return out_t.T


# ----------------------------------------------------------------------------------
# Parameter init (mimics the PyTorch module) and pure-JAX references for testing.
# ----------------------------------------------------------------------------------
def orthogonal_init(key, shape):
    """Mimic torch.nn.init.orthogonal_ for a 2-D weight of shape (out, in)."""
    n_rows, n_cols = shape
    a = jax.random.normal(key, (max(n_rows, n_cols), min(n_rows, n_cols)),
                          dtype=jnp.float32)
    q, r = jnp.linalg.qr(a)
    sign = jnp.sign(jnp.diag(r))
    sign = jnp.where(sign == 0, 1.0, sign)
    q = q * sign[None, :]
    if n_rows < n_cols:
        q = q.T
    return q[:n_rows, :n_cols]


def init_critic_params(key, input_dim, output_dim, hidden=(64, 64)):
    dims_in = [input_dim] + list(hidden)
    dims_out = list(hidden) + [output_dim]
    keys = jax.random.split(key, 2 * len(dims_in))
    params = {}
    for i, (din, dout) in enumerate(zip(dims_in, dims_out)):
        w_key, b_key = keys[2 * i], keys[2 * i + 1]
        bound = 1.0 / jnp.sqrt(jnp.float32(din))               # default Linear bias init
        params[f"w{i+1}"] = orthogonal_init(w_key, (dout, din))  # PyTorch layout (out, in)
        params[f"b{i+1}"] = jax.random.uniform(b_key, (dout,), jnp.float32, -bound, bound)
    return params


def critic_reference_f32(x, params):
    """Pure f32 reference matching the PyTorch module's math (weights are (out, in))."""
    h = jnp.maximum(x @ params["w1"].T + params["b1"], 0.0)
    h = jnp.maximum(h @ params["w2"].T + params["b2"], 0.0)
    return h @ params["w3"].T + params["b3"]


def critic_reference_bf16(x, params):
    """Reference matching the kernel's opted-in bf16 numerics (f32 accumulation)."""
    dn = (((1,), (1,)), ((), ()))
    w1 = params["w1"].astype(jnp.bfloat16)
    w2 = params["w2"].astype(jnp.bfloat16)
    w3 = params["w3"].astype(jnp.bfloat16)
    h = jax.lax.dot_general(x.astype(jnp.bfloat16), w1, dn,
                            preferred_element_type=jnp.float32)
    h = jnp.maximum(h + params["b1"], 0.0)
    h = jax.lax.dot_general(h.astype(jnp.bfloat16), w2, dn,
                            preferred_element_type=jnp.float32)
    h = jnp.maximum(h + params["b2"], 0.0)
    out = jax.lax.dot_general(h.astype(jnp.bfloat16), w3, dn,
                              preferred_element_type=jnp.float32)
    return out + params["b3"]


if __name__ == "__main__":
    key = jax.random.PRNGKey(0)
    k_param, k_x, k_x2 = jax.random.split(key, 3)

    batch = 8
    input_dim = 32
    output_dim = 1

    params = init_critic_params(k_param, input_dim, output_dim)

    # Small-batch case (single full block, no masking).
    x = jax.random.normal(k_x, (batch, input_dim), dtype=jnp.float32)
    out = jax.block_until_ready(critic_forward(x, params))
    assert out.shape == (batch, output_dim), out.shape
    ref = critic_reference_f32(x, params)
    assert jnp.allclose(out, ref, atol=2e-2, rtol=2e-2), \
        f"f32 mismatch, max abs err {jnp.max(jnp.abs(out - ref))}"

    # Ragged multi-block grid: exercises the masked trailing partial block
    # (no wrapper-side padding of x, no output slice copy).
    batch2 = 300
    x2 = jax.random.normal(k_x2, (batch2, input_dim), dtype=jnp.float32)
    out2 = jax.block_until_ready(critic_forward(x2, params, block_rows=128))
    assert out2.shape == (batch2, output_dim), out2.shape
    ref2 = critic_reference_f32(x2, params)
    assert jnp.allclose(out2, ref2, atol=2e-2, rtol=2e-2), \
        f"f32 ragged mismatch, max abs err {jnp.max(jnp.abs(out2 - ref2))}"

    # Explicit opt-in bf16 path (accuracy trade for a value head).
    out_bf16 = jax.block_until_ready(
        critic_forward(x2, params, block_rows=128, use_bf16=True))
    ref_bf16 = critic_reference_bf16(x2, params)
    assert out_bf16.shape == (batch2, output_dim), out_bf16.shape
    assert jnp.allclose(out_bf16, ref_bf16, atol=5e-2, rtol=5e-2), \
        f"bf16 mismatch, max abs err {jnp.max(jnp.abs(out_bf16 - ref_bf16))}"

    print("KERNEL_OK")
</pallas_src>

<mosaic_0001>
module attributes {stable_mosaic.version = 11 : i64} {
  func.func @critic_kernel(%arg0: i32, %arg1: memref<8x32xf32, #tpu.memory_space<vmem>>, %arg2: memref<64x32xf32, #tpu.memory_space<vmem>>, %arg3: memref<64x1xf32, #tpu.memory_space<vmem>>, %arg4: memref<64x64xf32, #tpu.memory_space<vmem>>, %arg5: memref<64x1xf32, #tpu.memory_space<vmem>>, %arg6: memref<1x64xf32, #tpu.memory_space<vmem>>, %arg7: memref<1x1xf32, #tpu.memory_space<vmem>>, %arg8: memref<1x8xf32, #tpu.memory_space<vmem>>) attributes {dimension_semantics = [#tpu.dimension_semantics<parallel>], iteration_bounds = array<i64: 1>, scalar_prefetch = 0 : i64, scratch_operands = 0 : i64, tpu.core_type = #tpu.core_type<tc>, window_params = [{transform_indices = @transform_0, window_bounds = array<i64: 8, 32>}, {pipeline_mode = #tpu.pipeline_mode<synchronous>, transform_indices = @transform_1, window_bounds = array<i64: 64, 32>}, {pipeline_mode = #tpu.pipeline_mode<synchronous>, transform_indices = @transform_2, window_bounds = array<i64: 64, 1>}, {pipeline_mode = #tpu.pipeline_mode<synchronous>, transform_indices = @transform_3, window_bounds = array<i64: 64, 64>}, {pipeline_mode = #tpu.pipeline_mode<synchronous>, transform_indices = @transform_4, window_bounds = array<i64: 64, 1>}, {pipeline_mode = #tpu.pipeline_mode<synchronous>, transform_indices = @transform_5, window_bounds = array<i64: 1, 64>}, {pipeline_mode = #tpu.pipeline_mode<synchronous>, transform_indices = @transform_6, window_bounds = array<i64: 1, 1>}, {transform_indices = @transform_7, window_bounds = array<i64: 1, 8>}]} {
    %c0 = arith.constant 0 : index
    %c0_0 = arith.constant 0 : index
    %0 = vector.load %arg1[%c0, %c0_0] : memref<8x32xf32, #tpu.memory_space<vmem>>, vector<8x32xf32>
    %c0_1 = arith.constant 0 : index
    %c0_2 = arith.constant 0 : index
    %1 = vector.load %arg2[%c0_1, %c0_2] : memref<64x32xf32, #tpu.memory_space<vmem>>, vector<64x32xf32>
    %cst = arith.constant dense<0.000000e+00> : vector<64x8xf32>
    %2 = tpu.matmul %1, %0, %cst {dimension_numbers = #tpu.dot_dimension_numbers<[1], [1], [0], [0], [0, 0, 1, 0], [], []>} : vector<64x32xf32>, vector<8x32xf32>, vector<64x8xf32> -> vector<64x8xf32>
    %c0_3 = arith.constant 0 : index
    %c0_4 = arith.constant 0 : index
    %3 = vector.load %arg3[%c0_3, %c0_4] : memref<64x1xf32, #tpu.memory_space<vmem>>, vector<64x1xf32>
    %4 = vector.broadcast %3 : vector<64x1xf32> to vector<64x8xf32>
    %5 = arith.addf %2, %4 : vector<64x8xf32>
    %cst_5 = arith.constant 0.000000e+00 : f32
    %6 = vector.broadcast %cst_5 : f32 to vector<64x8xf32>
    %7 = arith.maximumf %5, %6 : vector<64x8xf32>
    %c0_6 = arith.constant 0 : index
    %c0_7 = arith.constant 0 : index
    %8 = vector.load %arg4[%c0_6, %c0_7] : memref<64x64xf32, #tpu.memory_space<vmem>>, vector<64x64xf32>
    %cst_8 = arith.constant dense<0.000000e+00> : vector<64x8xf32>
    %9 = tpu.matmul %8, %7, %cst_8 {dimension_numbers = #tpu.dot_dimension_numbers<[1], [0], [0], [1], [0, 0, 1, 1], [], []>} : vector<64x64xf32>, vector<64x8xf32>, vector<64x8xf32> -> vector<64x8xf32>
    %c0_9 = arith.constant 0 : index
    %c0_10 = arith.constant 0 : index
    %10 = vector.load %arg5[%c0_9, %c0_10] : memref<64x1xf32, #tpu.memory_space<vmem>>, vector<64x1xf32>
    %11 = vector.broadcast %10 : vector<64x1xf32> to vector<64x8xf32>
    %12 = arith.addf %9, %11 : vector<64x8xf32>
    %cst_11 = arith.constant 0.000000e+00 : f32
    %13 = vector.broadcast %cst_11 : f32 to vector<64x8xf32>
    %14 = arith.maximumf %12, %13 : vector<64x8xf32>
    %c0_12 = arith.constant 0 : index
    %c0_13 = arith.constant 0 : index
    %15 = vector.load %arg6[%c0_12, %c0_13] : memref<1x64xf32, #tpu.memory_space<vmem>>, vector<1x64xf32>
    %cst_14 = arith.constant dense<0.000000e+00> : vector<1x8xf32>
    %16 = tpu.matmul %15, %14, %cst_14 {dimension_numbers = #tpu.dot_dimension_numbers<[1], [0], [0], [1], [0, 0, 1, 1], [], []>} : vector<1x64xf32>, vector<64x8xf32>, vector<1x8xf32> -> vector<1x8xf32>
    %c0_15 = arith.constant 0 : index
    %c0_16 = arith.constant 0 : index
    %17 = vector.load %arg7[%c0_15, %c0_16] : memref<1x1xf32, #tpu.memory_space<vmem>>, vector<1x1xf32>
    %18 = vector.broadcast %17 : vector<1x1xf32> to vector<1x8xf32>
    %19 = arith.addf %16, %18 : vector<1x8xf32>
    %c0_17 = arith.constant 0 : index
    %c0_18 = arith.constant 0 : index
    %20 = vector.load %arg8[%c0_17, %c0_18] : memref<1x8xf32, #tpu.memory_space<vmem>>, vector<1x8xf32>
    tpu.vector_store %arg8[%c0_17, %c0_18], %19 {strides = array<i32>} : memref<1x8xf32, #tpu.memory_space<vmem>>, vector<1x8xf32>,
    return
  }
  func.func @transform_0(%arg0: i32) -> (i32, i32) {
    %c0_i32 = arith.constant 0 : i32
    %c0_i32_0 = arith.constant 0 : i32
    return %arg0, %c0_i32 : i32, i32
  }
  func.func @transform_1(%arg0: i32) -> (i32, i32) {
    %c0_i32 = arith.constant 0 : i32
    %c0_i32_0 = arith.constant 0 : i32
    %c0_i32_1 = arith.constant 0 : i32
    return %c0_i32, %c0_i32_0 : i32, i32
  }
  func.func @transform_2(%arg0: i32) -> (i32, i32) {
    %c0_i32 = arith.constant 0 : i32
    %c0_i32_0 = arith.constant 0 : i32
    %c0_i32_1 = arith.constant 0 : i32
    return %c0_i32, %c0_i32_0 : i32, i32
  }
  func.func @transform_3(%arg0: i32) -> (i32, i32) {
    %c0_i32 = arith.constant 0 : i32
    %c0_i32_0 = arith.constant 0 : i32
    %c0_i32_1 = arith.constant 0 : i32
    return %c0_i32, %c0_i32_0 : i32, i32
  }
  func.func @transform_4(%arg0: i32) -> (i32, i32) {
    %c0_i32 = arith.constant 0 : i32
    %c0_i32_0 = arith.constant 0 : i32
    %c0_i32_1 = arith.constant 0 : i32
    return %c0_i32, %c0_i32_0 : i32, i32
  }
  func.func @transform_5(%arg0: i32) -> (i32, i32) {
    %c0_i32 = arith.constant 0 : i32
    %c0_i32_0 = arith.constant 0 : i32
    %c0_i32_1 = arith.constant 0 : i32
    return %c0_i32, %c0_i32_0 : i32, i32
  }
  func.func @transform_6(%arg0: i32) -> (i32, i32) {
    %c0_i32 = arith.constant 0 : i32
    %c0_i32_0 = arith.constant 0 : i32
    %c0_i32_1 = arith.constant 0 : i32
    return %c0_i32, %c0_i32_0 : i32, i32
  }
  func.func @transform_7(%arg0: i32) -> (i32, i32) {
    %c0_i32 = arith.constant 0 : i32
    %c0_i32_0 = arith.constant 0 : i32
    return %c0_i32, %arg0 : i32, i32
  }
}

</mosaic_0001>

<llo_original>
// kernel: critic_forward.1
$region0: #{critic_forward.1}
  #allocation0 [shape = 'u32[]', space=smem, size = 0x4, offset = 0x4, fixed_abs, tag = 'smem constant byte address 0x4 - core index']
  #allocation1 [shape = 'u32[144,128]{1,0:T(1,128)}', space=vmem, size = 0x12000, scoped, tag = 'internal scratch']
  #allocation2 [shape = 'f32[1,1]{1,0:T(1,128)S(1)}', space=vmem, size = 0x200, scoped, tag = 'scoped memory for critic_forward.1']
  %s0 = inlined_call_operand.vmem [shape: f32[8,32], index: 0, kind: input, shape index: {}]
  %s1 = inlined_call_operand.vmem [shape: f32[64,32], index: 1, kind: input, shape index: {}]
  %s2 = inlined_call_operand.vmem [shape: f32[64,1], index: 2, kind: input, shape index: {}]
  %s3 = inlined_call_operand.vmem [shape: f32[64,64], index: 3, kind: input, shape index: {}]
  %s4 = inlined_call_operand.vmem [shape: f32[64,1], index: 4, kind: input, shape index: {}]
  %s5 = inlined_call_operand.vmem [shape: f32[1,64], index: 5, kind: input, shape index: {}]
  %s6 = inlined_call_operand.<no memory space> [shape: f32[1,1], index: 6, kind: input, shape index: {}]
  %s7 = inlined_call_operand.hbm [shape: f32[1,8], index: 7, kind: output, shape index: {}]
  %s8 = sld [smem:[#allocation0]]
  $region38: #{critic_forward.1} parent=0
    _
  %s10 = ssub.s32 1, %s8
  %s11 = scalar_select 0, %s10, %s8
  %v12 = vstv %s6
  %13 = vst [vmem:[#allocation2] sm:$0x1] %v12
  $region1: #{critic_forward.1} parent=0
    #allocation3 [shape = 'u8[512]{0}', space=vmem, size = 0x400, scoped, tag = 'output window, operand 0, single buffered']
    #allocation4 [shape = 's32[1]{0}', space=sflag, size = 0x4, scoped, tag = 'scoped memory for critic_forward.1']
    %14 = vsyncpa [#allocation4], 0
    // Predicated region
    $region2: #{critic_forward.1} parent=1 // pred_check
      _
    $region3: #{critic_forward.1} parent=1 // pred_check_branch
      %16 = sbr.rel (0) target = $region5
    $region4: #{critic_forward.1} parent=1 // pred_region
      _
    $region5: #{critic_forward.1} parent=1 // pred_fallthru
      _
    // Predicated region
    $region6: #{critic_forward.1} parent=1 // pred_check
      _
    $region7: #{critic_forward.1} parent=1 // pred_check_branch
      %18 = sbr.rel (0) target = $region9
    $region8: #{critic_forward.1} parent=1 // pred_region
      _
    $region9: #{critic_forward.1} parent=1 // pred_fallthru
      _
    // Predicated region
    $region10: #{critic_forward.1} parent=1 // pred_check
      _
    $region11: #{critic_forward.1} parent=1 // pred_check_branch
      %20 = sbr.rel (0) target = $region13
    $region12: #{critic_forward.1} parent=1 // pred_region
      _
    $region13: #{critic_forward.1} parent=1 // pred_fallthru
      _
    // Predicated region
    $region14: #{critic_forward.1} parent=1 // pred_check
      _
    $region15: #{critic_forward.1} parent=1 // pred_check_branch
      %22 = sbr.rel (0) target = $region17
    $region16: #{critic_forward.1} parent=1 // pred_region
      _
    $region17: #{critic_forward.1} parent=1 // pred_fallthru
      _
    // Predicated region
    $region18: #{critic_forward.1} parent=1 // pred_check
      _
    $region19: #{critic_forward.1} parent=1 // pred_check_branch
      %24 = sbr.rel (0) target = $region21
    $region20: #{critic_forward.1} parent=1 // pred_region
      _
    $region21: #{critic_forward.1} parent=1 // pred_fallthru
      _
    // Predicated region
    $region22: #{critic_forward.1} parent=1 // pred_check
      _
    $region23: #{critic_forward.1} parent=1 // pred_check_branch
      %26 = sbr.rel (0) target = $region25
    $region24: #{critic_forward.1} parent=1 // pred_region
      _
    $region25: #{critic_forward.1} parent=1 // pred_fallthru
      _
    // Predicated region
    $region26: #{critic_forward.1} parent=1 // pred_check
      _
    $region27: #{critic_forward.1} parent=1 // pred_check_branch
      %28 = sbr.rel (0) target = $region29
    $region28: #{critic_forward.1} parent=1 // pred_region
      _
    $region29: #{critic_forward.1} parent=1 // pred_fallthru
      _
    %v29 = vld [vmem:[%s0] sm:$0xff]
    %v30 = vld [vmem:[%s1] sm:$0xff]
    %v31 = vld [vmem:[%s1 + $0x8] sm:$0xff]
    %v32 = vld [vmem:[%s1 + $0x10] sm:$0xff]
    %v33 = vld [vmem:[%s1 + $0x18] sm:$0xff]
    %v34 = vld [vmem:[%s1 + $0x20] sm:$0xff]
    %v35 = vld [vmem:[%s1 + $0x28] sm:$0xff]
    %v36 = vld [vmem:[%s1 + $0x30] sm:$0xff]
    %v37 = vld [vmem:[%s1 + $0x38] sm:$0xff]
    %v38 = vld [vmem:[%s2] sm:$0xff]
    %v39 = vld [vmem:[%s2 + $0x8] sm:$0xff]
    %v40 = vld [vmem:[%s2 + $0x10] sm:$0xff]
    %v41 = vld [vmem:[%s2 + $0x18] sm:$0xff]
    %v42 = vld [vmem:[%s2 + $0x20] sm:$0xff]
    %v43 = vld [vmem:[%s2 + $0x28] sm:$0xff]
    %v44 = vld [vmem:[%s2 + $0x30] sm:$0xff]
    %v45 = vld [vmem:[%s2 + $0x38] sm:$0xff]
    %47 = vset.pattern.permute.xlu0 0
    %48 = vperm.xlu0 %47, %v38
    %v49 = vpop.permute.xlu0 %48
    %52 = vset.pattern.permute.xlu0 0
    %53 = vperm.xlu0 %52, %v39
    %v54 = vpop.permute.xlu0 %53
    %57 = vset.pattern.permute.xlu0 0
    %58 = vperm.xlu0 %57, %v40
    %v59 = vpop.permute.xlu0 %58
    %62 = vset.pattern.permute.xlu0 0
    %63 = vperm.xlu0 %62, %v41
    %v64 = vpop.permute.xlu0 %63
    %67 = vset.pattern.permute.xlu0 0
    %68 = vperm.xlu0 %67, %v42
    %v69 = vpop.permute.xlu0 %68
    %72 = vset.pattern.permute.xlu0 0
    %73 = vperm.xlu0 %72, %v43
    %v74 = vpop.permute.xlu0 %73
    %77 = vset.pattern.permute.xlu0 0
    %78 = vperm.xlu0 %77, %v44
    %v79 = vpop.permute.xlu0 %78
    %82 = vset.pattern.permute.xlu0 0
    %83 = vperm.xlu0 %82, %v45
    %v84 = vpop.permute.xlu0 %83
    %vm86 = vcmask 261120
    %v88 = vsel %vm86, %v30, 0
    %v91 = vsel %vm86, %v31, 0
    %v94 = vsel %vm86, %v32, 0
    %v97 = vsel %vm86, %v33, 0
    %v100 = vsel %vm86, %v34, 0
    %v103 = vsel %vm86, %v35, 0
    %v106 = vsel %vm86, %v36, 0
    %v109 = vsel %vm86, %v37, 0
    %v112 = vsel %vm86, %v29, 0
    %114 = vmatprep.subr.mxu0 0.0
    %115 = vmatpush1.xpose.msra.mxu0 0.0
    %116 = vmatprep.subr.mxu0 0.0
    %117 = vmatpush1.xpose.msra.mxu0 0.0
    %118 = vmatprep.subr.mxu0 0.0
    %119 = vmatpush1.xpose.msra.mxu0 0.0
    %120 = vmatprep.subr.mxu0 0.0
    %121 = vmatpush1.xpose.msra.mxu0 0.0
    %122 = vmatprep.subr.mxu0 0.0
    %123 = vmatpush1.xpose.msra.mxu0 0.0
    %124 = vmatprep.subr.mxu0 0.0
    %125 = vmatpush1.xpose.msra.mxu0 0.0
    %126 = vmatprep.subr.mxu0 0.0
    %127 = vmatpush1.xpose.msra.mxu0 0.0
    %128 = vmatprep.subr.mxu0 0.0
    %129 = vmatpush1.xpose.msra.mxu0 0.0
    %130 = vmatprep.subr.mxu0 0.0
    %131 = vmatpush1.xpose.msra.mxu0 0.0
    %132 = vmatprep.subr.mxu0 0.0
    %133 = vmatpush1.xpose.msra.mxu0 0.0
    %134 = vmatprep.subr.mxu0 0.0
    %135 = vmatpush1.xpose.msra.mxu0 0.0
    %136 = vmatprep.subr.mxu0 0.0
    %137 = vmatpush1.xpose.msra.mxu0 0.0
    %138 = vmatprep.subr.mxu0 0.0
    %139 = vmatpush1.xpose.msra.mxu0 0.0
    %140 = vmatprep.subr.mxu0 0.0
    %141 = vmatpush1.xpose.msra.mxu0 0.0
    %142 = vmatprep.subr.mxu0 0.0
    %143 = vmatpush1.xpose.msra.mxu0 0.0
    %144 = vmatprep.subr.mxu0 0.0
    %145 = vmatpush1.xpose.msra.mxu0 %v112
    %146 = vmatprep.subr.mxu0 0.0
    %147 = vmatpush2.xpose.msra.mxu0 0.0
    %148 = vmatprep.subr.mxu0 0.0
    %149 = vmatpush2.xpose.msra.mxu0 0.0
    %150 = vmatprep.subr.mxu0 0.0
    %151 = vmatpush2.xpose.msra.mxu0 0.0
    %152 = vmatprep.subr.mxu0 0.0
    %153 = vmatpush2.xpose.msra.mxu0 0.0
    %154 = vmatprep.subr.mxu0 0.0
    %155 = vmatpush2.xpose.msra.mxu0 0.0
    %156 = vmatprep.subr.mxu0 0.0
    %157 = vmatpush2.xpose.msra.mxu0 0.0
    %158 = vmatprep.subr.mxu0 0.0
    %159 = vmatpush2.xpose.msra.mxu0 0.0
    %160 = vmatprep.subr.mxu0 0.0
    %161 = vmatpush2.xpose.msra.mxu0 0.0
    %162 = vmatprep.subr.mxu0 0.0
    %163 = vmatpush2.xpose.msra.mxu0 0.0
    %164 = vmatprep.subr.mxu0 0.0
    %165 = vmatpush2.xpose.msra.mxu0 0.0
    %166 = vmatprep.subr.mxu0 0.0
    %167 = vmatpush2.xpose.msra.mxu0 0.0
    %168 = vmatprep.subr.mxu0 0.0
    %169 = vmatpush2.xpose.msra.mxu0 0.0
    %170 = vmatprep.subr.mxu0 0.0
    %171 = vmatpush2.xpose.msra.mxu0 0.0
    %172 = vmatprep.subr.mxu0 0.0
    %173 = vmatpush2.xpose.msra.mxu0 0.0
    %174 = vmatprep.subr.mxu0 0.0
    %175 = vmatpush2.xpose.msra.mxu0 0.0
    %176 = vmatprep.subr.mxu0 0.0
    %177 = vmatpush2.xpose.msra.mxu0 0.0
    %178 = vmatprep.mubr.f32.mxu0 0.0
    %179 = vmatmul.mubr.f32.gmra.mxu0 %v88
    %v180 = vpop.f32.mrf.mxu0
    %v181 = vadd.f32 %v49, %v180
    %v182 = vpop.f32.mrf.mxu0
    %183 = vmatprep.mubr.f32.mxu0 0.0
    %184 = vmatmul.mubr.f32.gmra.mxu0 %v91
    %v185 = vpop.f32.mrf.mxu0
    %v186 = vadd.f32 %v54, %v185
    %v187 = vpop.f32.mrf.mxu0
    %188 = vmatprep.mubr.f32.mxu0 0.0
    %189 = vmatmul.mubr.f32.gmra.mxu0 %v94
    %v190 = vpop.f32.mrf.mxu0
    %v191 = vadd.f32 %v59, %v190
    %v192 = vpop.f32.mrf.mxu0
    %193 = vmatprep.mubr.f32.mxu0 0.0
    %194 = vmatmul.mubr.f32.gmra.mxu0 %v97
    %v195 = vpop.f32.mrf.mxu0
    %v196 = vadd.f32 %v64, %v195
    %v197 = vpop.f32.mrf.mxu0
    %198 = vmatprep.mubr.f32.mxu0 0.0
    %199 = vmatmul.mubr.f32.gmra.mxu0 %v100
    %v200 = vpop.f32.mrf.mxu0
    %v201 = vadd.f32 %v69, %v200
    %v202 = vpop.f32.mrf.mxu0
    %203 = vmatprep.mubr.f32.mxu0 0.0
    %204 = vmatmul.mubr.f32.gmra.mxu0 %v103
    %v205 = vpop.f32.mrf.mxu0
    %v206 = vadd.f32 %v74, %v205
    %v207 = vpop.f32.mrf.mxu0
    %208 = vmatprep.mubr.f32.mxu0 0.0
    %209 = vmatmul.mubr.f32.gmra.mxu0 %v106
    %v210 = vpop.f32.mrf.mxu0
    %v211 = vadd.f32 %v79, %v210
    %v212 = vpop.f32.mrf.mxu0
    %213 = vmatprep.mubr.f32.mxu0 0.0
    %214 = vmatmul.mubr.f32.gmra.mxu0 %v109
    %v215 = vpop.f32.mrf.mxu0
    %v216 = vadd.f32 %v84, %v215
    %v217 = vpop.f32.mrf.mxu0
    %218 = vdwg.mxu0
    %v219 = vmax.f32 %v181, 0.0
    %v220 = vmax.f32 %v186, 0.0
    %v221 = vmax.f32 %v191, 0.0
    %v222 = vmax.f32 %v196, 0.0
    %v223 = vmax.f32 %v201, 0.0
    %v224 = vmax.f32 %v206, 0.0
    %v225 = vmax.f32 %v211, 0.0
    %v226 = vmax.f32 %v216, 0.0
    %v227 = vld [vmem:[%s3] sm:$0xff]
    %v228 = vld [vmem:[%s3 + $0x8] sm:$0xff]
    %v229 = vld [vmem:[%s3 + $0x10] sm:$0xff]
    %v230 = vld [vmem:[%s3 + $0x18] sm:$0xff]
    %v231 = vld [vmem:[%s3 + $0x20] sm:$0xff]
    %v232 = vld [vmem:[%s3 + $0x28] sm:$0xff]
    %v233 = vld [vmem:[%s3 + $0x30] sm:$0xff]
    %v234 = vld [vmem:[%s3 + $0x38] sm:$0xff]
    %v235 = vld [vmem:[%s4] sm:$0xff]
    %v236 = vld [vmem:[%s4 + $0x8] sm:$0xff]
    %v237 = vld [vmem:[%s4 + $0x10] sm:$0xff]
    %v238 = vld [vmem:[%s4 + $0x18] sm:$0xff]
    %v239 = vld [vmem:[%s4 + $0x20] sm:$0xff]
    %v240 = vld [vmem:[%s4 + $0x28] sm:$0xff]
    %v241 = vld [vmem:[%s4 + $0x30] sm:$0xff]
    %v242 = vld [vmem:[%s4 + $0x38] sm:$0xff]
    %244 = vset.pattern.permute.xlu0 0
    %245 = vperm.xlu0 %244, %v235
    %v246 = vpop.permute.xlu0 %245
    %249 = vset.pattern.permute.xlu0 0
    %250 = vperm.xlu0 %249, %v236
    %v251 = vpop.permute.xlu0 %250
    %254 = vset.pattern.permute.xlu0 0
    %255 = vperm.xlu0 %254, %v237
    %v256 = vpop.permute.xlu0 %255
    %259 = vset.pattern.permute.xlu0 0
    %260 = vperm.xlu0 %259, %v238
    %v261 = vpop.permute.xlu0 %260
    %264 = vset.pattern.permute.xlu0 0
    %265 = vperm.xlu0 %264, %v239
    %v266 = vpop.permute.xlu0 %265
    %269 = vset.pattern.permute.xlu0 0
    %270 = vperm.xlu0 %269, %v240
    %v271 = vpop.permute.xlu0 %270
    %274 = vset.pattern.permute.xlu0 0
    %275 = vperm.xlu0 %274, %v241
    %v276 = vpop.permute.xlu0 %275
    %279 = vset.pattern.permute.xlu0 0
    %280 = vperm.xlu0 %279, %v242
    %v281 = vpop.permute.xlu0 %280
    %vm283 = vcmask 523264
    %v285 = vsel %vm283, %v227, 0
    %v288 = vsel %vm283, %v228, 0
    %v291 = vsel %vm283, %v229, 0
    %v294 = vsel %vm283, %v230, 0
    %v297 = vsel %vm283, %v231, 0
    %v300 = vsel %vm283, %v232, 0
    %v303 = vsel %vm283, %v233, 0
    %v306 = vsel %vm283, %v234, 0
    %308 = vmatprep.subr.mxu0 0.0
    %309 = vmatpush1.msra.mxu0 0.0
    %310 = vmatprep.subr.mxu0 0.0
    %311 = vmatpush1.msra.mxu0 0.0
    %312 = vmatprep.subr.mxu0 0.0
    %313 = vmatpush1.msra.mxu0 0.0
    %314 = vmatprep.subr.mxu0 0.0
    %315 = vmatpush1.msra.mxu0 0.0
    %316 = vmatprep.subr.mxu0 0.0
    %317 = vmatpush1.msra.mxu0 0.0
    %318 = vmatprep.subr.mxu0 0.0
    %319 = vmatpush1.msra.mxu0 0.0
    %320 = vmatprep.subr.mxu0 0.0
    %321 = vmatpush1.msra.mxu0 0.0
    %322 = vmatprep.subr.mxu0 0.0
    %323 = vmatpush1.msra.mxu0 0.0
    %324 = vmatprep.subr.mxu0 0.0
    %325 = vmatpush1.msra.mxu0 %v226
    %326 = vmatprep.subr.mxu0 0.0
    %327 = vmatpush1.msra.mxu0 %v225
    %328 = vmatprep.subr.mxu0 0.0
    %329 = vmatpush1.msra.mxu0 %v224
    %330 = vmatprep.subr.mxu0 0.0
    %331 = vmatpush1.msra.mxu0 %v223
    %332 = vmatprep.subr.mxu0 0.0
    %333 = vmatpush1.msra.mxu0 %v222
    %334 = vmatprep.subr.mxu0 0.0
    %335 = vmatpush1.msra.mxu0 %v221
    %336 = vmatprep.subr.mxu0 0.0
    %337 = vmatpush1.msra.mxu0 %v220
    %338 = vmatprep.subr.mxu0 0.0
    %339 = vmatpush1.msra.mxu0 %v219
    %340 = vmatprep.subr.mxu0 0.0
    %341 = vmatpush2.msra.mxu0 0.0
    %342 = vmatprep.subr.mxu0 0.0
    %343 = vmatpush2.msra.mxu0 0.0
    %344 = vmatprep.subr.mxu0 0.0
    %345 = vmatpush2.msra.mxu0 0.0
    %346 = vmatprep.subr.mxu0 0.0
    %347 = vmatpush2.msra.mxu0 0.0
    %348 = vmatprep.subr.mxu0 0.0
    %349 = vmatpush2.msra.mxu0 0.0
    %350 = vmatprep.subr.mxu0 0.0
    %351 = vmatpush2.msra.mxu0 0.0
    %352 = vmatprep.subr.mxu0 0.0
    %353 = vmatpush2.msra.mxu0 0.0
    %354 = vmatprep.subr.mxu0 0.0
    %355 = vmatpush2.msra.mxu0 0.0
    %356 = vmatprep.subr.mxu0 0.0
    %357 = vmatpush2.msra.mxu0 0.0
    %358 = vmatprep.subr.mxu0 0.0
    %359 = vmatpush2.msra.mxu0 0.0
    %360 = vmatprep.subr.mxu0 0.0
    %361 = vmatpush2.msra.mxu0 0.0
    %362 = vmatprep.subr.mxu0 0.0
    %363 = vmatpush2.msra.mxu0 0.0
    %364 = vmatprep.subr.mxu0 0.0
    %365 = vmatpush2.msra.mxu0 0.0
    %366 = vmatprep.subr.mxu0 0.0
    %367 = vmatpush2.msra.mxu0 0.0
    %368 = vmatprep.subr.mxu0 0.0
    %369 = vmatpush2.msra.mxu0 0.0
    %370 = vmatprep.subr.mxu0 0.0
    %371 = vmatpush2.msra.mxu0 0.0
    %372 = vmatprep.mubr.f32.mxu0 0.0
    %373 = vmatmul.mubr.f32.gmra.mxu0 %v285
    %v374 = vpop.f32.mrf.mxu0
    %v375 = vadd.f32 %v246, %v374
    %v376 = vpop.f32.mrf.mxu0
    %377 = vmatprep.mubr.f32.mxu0 0.0
    %378 = vmatmul.mubr.f32.gmra.mxu0 %v288
    %v379 = vpop.f32.mrf.mxu0
    %v380 = vadd.f32 %v251, %v379
    %v381 = vpop.f32.mrf.mxu0
    %382 = vmatprep.mubr.f32.mxu0 0.0
    %383 = vmatmul.mubr.f32.gmra.mxu0 %v291
    %v384 = vpop.f32.mrf.mxu0
    %v385 = vadd.f32 %v256, %v384
    %v386 = vpop.f32.mrf.mxu0
    %387 = vmatprep.mubr.f32.mxu0 0.0
    %388 = vmatmul.mubr.f32.gmra.mxu0 %v294
    %v389 = vpop.f32.mrf.mxu0
    %v390 = vadd.f32 %v261, %v389
    %v391 = vpop.f32.mrf.mxu0
    %392 = vmatprep.mubr.f32.mxu0 0.0
    %393 = vmatmul.mubr.f32.gmra.mxu0 %v297
    %v394 = vpop.f32.mrf.mxu0
    %v395 = vadd.f32 %v266, %v394
    %v396 = vpop.f32.mrf.mxu0
    %397 = vmatprep.mubr.f32.mxu0 0.0
    %398 = vmatmul.mubr.f32.gmra.mxu0 %v300
    %v399 = vpop.f32.mrf.mxu0
    %v400 = vadd.f32 %v271, %v399
    %v401 = vpop.f32.mrf.mxu0
    %402 = vmatprep.mubr.f32.mxu0 0.0
    %403 = vmatmul.mubr.f32.gmra.mxu0 %v303
    %v404 = vpop.f32.mrf.mxu0
    %v405 = vadd.f32 %v276, %v404
    %v406 = vpop.f32.mrf.mxu0
    %407 = vmatprep.mubr.f32.mxu0 0.0
    %408 = vmatmul.mubr.f32.gmra.mxu0 %v306
    %v409 = vpop.f32.mrf.mxu0
    %v410 = vadd.f32 %v281, %v409
    %v411 = vpop.f32.mrf.mxu0
    %412 = vdwg.mxu0
    %v413 = vmax.f32 %v375, 0.0
    %v414 = vmax.f32 %v380, 0.0
    %v415 = vmax.f32 %v385, 0.0
    %v416 = vmax.f32 %v390, 0.0
    %v417 = vmax.f32 %v395, 0.0
    %v418 = vmax.f32 %v400, 0.0
    %v419 = vmax.f32 %v405, 0.0
    %v420 = vmax.f32 %v410, 0.0
    %v421 = vld [vmem:[%s5] sm:$0x1]
    %v422 = vld [vmem:[#allocation2] sm:$0x1]
    %424 = vset.pattern.permute.xlu0 0
    %425 = vperm.xlu0 %424, %v422
    %v426 = vpop.permute.xlu0 %425
    %v428 = vlaneseq
    %v429 = vshrl.u32 %v428, 7
    %v430 = vsub.s32 0, %v429
    %v431 = vrot.slane %v426, %v430
    %v433 = vsel %vm283, %v421, 0
    %435 = vmatprep.subr.mxu0 0.0
    %436 = vmatpush1.msra.mxu0 0.0
    %437 = vmatprep.subr.mxu0 0.0
    %438 = vmatpush1.msra.mxu0 0.0
    %439 = vmatprep.subr.mxu0 0.0
    %440 = vmatpush1.msra.mxu0 0.0
    %441 = vmatprep.subr.mxu0 0.0
    %442 = vmatpush1.msra.mxu0 0.0
    %443 = vmatprep.subr.mxu0 0.0
    %444 = vmatpush1.msra.mxu0 0.0
    %445 = vmatprep.subr.mxu0 0.0
    %446 = vmatpush1.msra.mxu0 0.0
    %447 = vmatprep.subr.mxu0 0.0
    %448 = vmatpush1.msra.mxu0 0.0
    %449 = vmatprep.subr.mxu0 0.0
    %450 = vmatpush1.msra.mxu0 0.0
    %451 = vmatprep.subr.mxu0 0.0
    %452 = vmatpush1.msra.mxu0 %v420
    %453 = vmatprep.subr.mxu0 0.0
    %454 = vmatpush1.msra.mxu0 %v419
    %455 = vmatprep.subr.mxu0 0.0
    %456 = vmatpush1.msra.mxu0 %v418
    %457 = vmatprep.subr.mxu0 0.0
    %458 = vmatpush1.msra.mxu0 %v417
    %459 = vmatprep.subr.mxu0 0.0
    %460 = vmatpush1.msra.mxu0 %v416
    %461 = vmatprep.subr.mxu0 0.0
    %462 = vmatpush1.msra.mxu0 %v415
    %463 = vmatprep.subr.mxu0 0.0
    %464 = vmatpush1.msra.mxu0 %v414
    %465 = vmatprep.subr.mxu0 0.0
    %466 = vmatpush1.msra.mxu0 %v413
    %467 = vmatprep.subr.mxu0 0.0
    %468 = vmatpush2.msra.mxu0 0.0
    %469 = vmatprep.subr.mxu0 0.0
    %470 = vmatpush2.msra.mxu0 0.0
    %471 = vmatprep.subr.mxu0 0.0
    %472 = vmatpush2.msra.mxu0 0.0
    %473 = vmatprep.subr.mxu0 0.0
    %474 = vmatpush2.msra.mxu0 0.0
    %475 = vmatprep.subr.mxu0 0.0
    %476 = vmatpush2.msra.mxu0 0.0
    %477 = vmatprep.subr.mxu0 0.0
    %478 = vmatpush2.msra.mxu0 0.0
    %479 = vmatprep.subr.mxu0 0.0
    %480 = vmatpush2.msra.mxu0 0.0
    %481 = vmatprep.subr.mxu0 0.0
    %482 = vmatpush2.msra.mxu0 0.0
    %483 = vmatprep.subr.mxu0 0.0
    %484 = vmatpush2.msra.mxu0 0.0
    %485 = vmatprep.subr.mxu0 0.0
    %486 = vmatpush2.msra.mxu0 0.0
    %487 = vmatprep.subr.mxu0 0.0
    %488 = vmatpush2.msra.mxu0 0.0
    %489 = vmatprep.subr.mxu0 0.0
    %490 = vmatpush2.msra.mxu0 0.0
    %491 = vmatprep.subr.mxu0 0.0
    %492 = vmatpush2.msra.mxu0 0.0
    %493 = vmatprep.subr.mxu0 0.0
    %494 = vmatpush2.msra.mxu0 0.0
    %495 = vmatprep.subr.mxu0 0.0
    %496 = vmatpush2.msra.mxu0 0.0
    %497 = vmatprep.subr.mxu0 0.0
    %498 = vmatpush2.msra.mxu0 0.0
    %499 = vmatprep.mubr.f32.mxu0 0.0
    %500 = vmatmul.mubr.f32.gmra.mxu0 %v433
    %v501 = vpop.f32.mrf.mxu0
    %v502 = vadd.f32 %v431, %v501
    %v503 = vpop.f32.mrf.mxu0
    %504 = vdwg.mxu0
    %vm505 = vcmask 57344
    %506 = vst.msk [vmem:[#allocation3] sm:$0x1] %vm505, %v502
    // Predicated region
    $region30: #{critic_forward.1} parent=1 // pred_check
      _
    $region31: #{critic_forward.1} parent=1 // pred_check_branch
      %508 = sbr.rel (0) target = $region33
    $region32: #{critic_forward.1} parent=1 // pred_region
      %s510 = ssub.s32 16, 16
      %511 = vsyncadd [#allocation4], %s510
      %s513 = sshll.u32 [#allocation3], 4
      %s514 = int_to_ptr.vmem [resolvable:$true] %s513
      %516 = dma.vmem_to_hbm [thread:$0]  %s514, 16, %s7, [#allocation4]
    $region33: #{critic_forward.1} parent=1 // pred_fallthru
      _
    // Predicated region
    $region34: #{critic_forward.1} parent=1 // pred_check
      _
    $region35: #{critic_forward.1} parent=1 // pred_check_branch
      %518 = sbr.rel (0) target = $region37
    $region36: #{critic_forward.1} parent=1 // pred_region
      %519 = dma.done [#allocation4], 16
    $region37: #{critic_forward.1} parent=1 // pred_fallthru
      _
    %520 = vsyncpa [#allocation4], 1

</llo_original>
